<compile_context>
chip_gen: v7x
topology: tpu7x:2x2x1
jax: 0.10.0
libtpu: 0.0.40
codegen_flags: <defaults>
</compile_context>

<pallas_src>
import jax
import jax.numpy as jnp
from jax.experimental import pallas as pl
from jax.experimental.pallas import tpu as pltpu


# ----------------------------------------------------------------------------
# Fused kernel: fc1 + ReLU -> fc2 + ReLU -> fc3   (one row-tile per grid step)
# ----------------------------------------------------------------------------
def _relation_net_kernel(x_ref, w1_ref, b1_ref, w2_ref, b2_ref, w3_ref, b3_ref,
                         o_ref):
    x = x_ref[...]                                                    # (tm, C)
    h1 = jnp.dot(x, w1_ref[...], preferred_element_type=jnp.float32) + b1_ref[...]
    h1 = jnp.maximum(h1, 0.0)                                         # (tm, C//8)
    h2 = jnp.dot(h1, w2_ref[...], preferred_element_type=jnp.float32) + b2_ref[...]
    h2 = jnp.maximum(h2, 0.0)                                         # (tm, C//32)
    o_ref[...] = (
        jnp.dot(h2, w3_ref[...], preferred_element_type=jnp.float32) + b3_ref[...]
    )                                                                 # (tm, 1)


@jax.jit
def relation_network_forward(x, params, *, block_rows=512):
    n, c = x.shape
    w1, b1 = params["w1"], params["b1"]
    w2, b2 = params["w2"], params["b2"]
    w3, b3 = params["w3"], params["b3"]

    # Row tile: 8-aligned (sublane), capped at `block_rows`.
    n_aligned = -(-n // 8) * 8
    tm = min(block_rows, n_aligned)
    n_pad = -(-n // tm) * tm
    if n_pad != n:
        x = jnp.pad(x, ((0, n_pad - n), (0, 0)))
    grid = (n_pad // tm,)

    def _param_spec(shape):
        # Whole (tiny) parameter tensor, same block for every grid step.
        return pl.BlockSpec(shape, lambda i: (0, 0))

    out = pl.pallas_call(
        _relation_net_kernel,
        out_shape=jax.ShapeDtypeStruct((n_pad, 1), jnp.float32),
        grid_spec=pltpu.PrefetchScalarGridSpec(
            num_scalar_prefetch=0,
            grid=grid,
            in_specs=[
                pl.BlockSpec((tm, c), lambda i: (i, 0)),   # x row tile
                _param_spec(w1.shape), _param_spec(b1.shape),
                _param_spec(w2.shape), _param_spec(b2.shape),
                _param_spec(w3.shape), _param_spec(b3.shape),
            ],
            out_specs=pl.BlockSpec((tm, 1), lambda i: (i, 0)),
        ),
        compiler_params=pltpu.CompilerParams(
            dimension_semantics=("parallel",)),
    )(x, w1, b1, w2, b2, w3, b3)

    return out[:n]


# ----------------------------------------------------------------------------
# Parameters (PyTorch nn.Linear default init: U(-1/sqrt(fan_in), 1/sqrt(fan_in)))
# Weights stored as (in, out) so the kernel computes x @ W + b directly.
# ----------------------------------------------------------------------------
def _linear_params(key, fan_in, fan_out):
    kw, kb = jax.random.split(key)
    bound = 1.0 / (fan_in ** 0.5)
    w = jax.random.uniform(kw, (fan_in, fan_out), jnp.float32, -bound, bound)
    b = jax.random.uniform(kb, (1, fan_out), jnp.float32, -bound, bound)
    return w, b


def init_params(key, input_size):
    hidden = input_size // 8
    k1, k2, k3 = jax.random.split(key, 3)
    w1, b1 = _linear_params(k1, input_size, hidden)
    w2, b2 = _linear_params(k2, hidden, hidden // 4)
    w3, b3 = _linear_params(k3, hidden // 4, 1)     # column form for MXU matmul
    return dict(w1=w1, b1=b1, w2=w2, b2=b2, w3=w3, b3=b3)


def _reference(x, p):
    """Pure-JAX reference of RelationNetwork.forward (eval semantics)."""
    h1 = jnp.maximum(x @ p["w1"] + p["b1"], 0.0)
    h2 = jnp.maximum(h1 @ p["w2"] + p["b2"], 0.0)
    return h2 @ p["w3"] + p["b3"]


# ----------------------------------------------------------------------------
if __name__ == "__main__":
    N, C = 8, 64   # RelationNetwork(input_size=64): hidden = 8, hidden//4 = 2

    key = jax.random.PRNGKey(0)
    kx, kp = jax.random.split(key)
    x = jax.random.normal(kx, (N, C), jnp.float32)
    params = init_params(kp, C)

    out = relation_network_forward(x, params)
    out = jax.block_until_ready(out)
    assert out.shape == (N, 1) and out.dtype == jnp.float32

    ref = _reference(x, params)
    assert jnp.allclose(out, ref, atol=1e-5, rtol=1e-5)
    print("KERNEL_OK")
</pallas_src>

<mosaic_0001>
module attributes {stable_mosaic.version = 11 : i64} {
  func.func @_relation_net_kernel(%arg0: i32, %arg1: memref<8x64xf32, #tpu.memory_space<vmem>>, %arg2: memref<64x8xf32, #tpu.memory_space<vmem>>, %arg3: memref<1x8xf32, #tpu.memory_space<vmem>>, %arg4: memref<8x2xf32, #tpu.memory_space<vmem>>, %arg5: memref<1x2xf32, #tpu.memory_space<vmem>>, %arg6: memref<2x1xf32, #tpu.memory_space<vmem>>, %arg7: memref<1x1xf32, #tpu.memory_space<vmem>>, %arg8: memref<8x1xf32, #tpu.memory_space<vmem>>) attributes {dimension_semantics = [#tpu.dimension_semantics<parallel>], iteration_bounds = array<i64: 1>, scalar_prefetch = 0 : i64, scratch_operands = 0 : i64, tpu.core_type = #tpu.core_type<tc>, window_params = [{transform_indices = @transform_0, window_bounds = array<i64: 8, 64>}, {pipeline_mode = #tpu.pipeline_mode<synchronous>, transform_indices = @transform_1, window_bounds = array<i64: 64, 8>}, {pipeline_mode = #tpu.pipeline_mode<synchronous>, transform_indices = @transform_2, window_bounds = array<i64: 1, 8>}, {pipeline_mode = #tpu.pipeline_mode<synchronous>, transform_indices = @transform_3, window_bounds = array<i64: 8, 2>}, {pipeline_mode = #tpu.pipeline_mode<synchronous>, transform_indices = @transform_4, window_bounds = array<i64: 1, 2>}, {pipeline_mode = #tpu.pipeline_mode<synchronous>, transform_indices = @transform_5, window_bounds = array<i64: 2, 1>}, {pipeline_mode = #tpu.pipeline_mode<synchronous>, transform_indices = @transform_6, window_bounds = array<i64: 1, 1>}, {transform_indices = @transform_7, window_bounds = array<i64: 8, 1>}]} {
    %c0 = arith.constant 0 : index
    %c0_0 = arith.constant 0 : index
    %0 = vector.load %arg1[%c0, %c0_0] : memref<8x64xf32, #tpu.memory_space<vmem>>, vector<8x64xf32>
    %c0_1 = arith.constant 0 : index
    %c0_2 = arith.constant 0 : index
    %1 = vector.load %arg2[%c0_1, %c0_2] : memref<64x8xf32, #tpu.memory_space<vmem>>, vector<64x8xf32>
    %cst = arith.constant dense<0.000000e+00> : vector<8x8xf32>
    %2 = tpu.matmul %0, %1, %cst {dimension_numbers = #tpu.dot_dimension_numbers<[1], [0], [0], [1], [0, 0, 1, 1], [], []>} : vector<8x64xf32>, vector<64x8xf32>, vector<8x8xf32> -> vector<8x8xf32>
    %c0_3 = arith.constant 0 : index
    %c0_4 = arith.constant 0 : index
    %3 = vector.load %arg3[%c0_3, %c0_4] : memref<1x8xf32, #tpu.memory_space<vmem>>, vector<1x8xf32>
    %4 = vector.broadcast %3 : vector<1x8xf32> to vector<8x8xf32>
    %5 = arith.addf %2, %4 : vector<8x8xf32>
    %cst_5 = arith.constant 0.000000e+00 : f32
    %6 = vector.broadcast %cst_5 : f32 to vector<8x8xf32>
    %7 = arith.maximumf %5, %6 : vector<8x8xf32>
    %c0_6 = arith.constant 0 : index
    %c0_7 = arith.constant 0 : index
    %8 = vector.load %arg4[%c0_6, %c0_7] : memref<8x2xf32, #tpu.memory_space<vmem>>, vector<8x2xf32>
    %cst_8 = arith.constant dense<0.000000e+00> : vector<8x2xf32>
    %9 = tpu.matmul %7, %8, %cst_8 {dimension_numbers = #tpu.dot_dimension_numbers<[1], [0], [0], [1], [0, 0, 1, 1], [], []>} : vector<8x8xf32>, vector<8x2xf32>, vector<8x2xf32> -> vector<8x2xf32>
    %c0_9 = arith.constant 0 : index
    %c0_10 = arith.constant 0 : index
    %10 = vector.load %arg5[%c0_9, %c0_10] : memref<1x2xf32, #tpu.memory_space<vmem>>, vector<1x2xf32>
    %11 = vector.broadcast %10 : vector<1x2xf32> to vector<8x2xf32>
    %12 = arith.addf %9, %11 : vector<8x2xf32>
    %cst_11 = arith.constant 0.000000e+00 : f32
    %13 = vector.broadcast %cst_11 : f32 to vector<8x2xf32>
    %14 = arith.maximumf %12, %13 : vector<8x2xf32>
    %c0_12 = arith.constant 0 : index
    %c0_13 = arith.constant 0 : index
    %15 = vector.load %arg6[%c0_12, %c0_13] : memref<2x1xf32, #tpu.memory_space<vmem>>, vector<2x1xf32>
    %cst_14 = arith.constant dense<0.000000e+00> : vector<8x1xf32>
    %16 = tpu.matmul %14, %15, %cst_14 {dimension_numbers = #tpu.dot_dimension_numbers<[1], [0], [0], [1], [0, 0, 1, 1], [], []>} : vector<8x2xf32>, vector<2x1xf32>, vector<8x1xf32> -> vector<8x1xf32>
    %c0_15 = arith.constant 0 : index
    %c0_16 = arith.constant 0 : index
    %17 = vector.load %arg7[%c0_15, %c0_16] : memref<1x1xf32, #tpu.memory_space<vmem>>, vector<1x1xf32>
    %18 = vector.broadcast %17 : vector<1x1xf32> to vector<8x1xf32>
    %19 = arith.addf %16, %18 : vector<8x1xf32>
    %c0_17 = arith.constant 0 : index
    %c0_18 = arith.constant 0 : index
    %20 = vector.load %arg8[%c0_17, %c0_18] : memref<8x1xf32, #tpu.memory_space<vmem>>, vector<8x1xf32>
    tpu.vector_store %arg8[%c0_17, %c0_18], %19 {strides = array<i32>} : memref<8x1xf32, #tpu.memory_space<vmem>>, vector<8x1xf32>,
    return
  }
  func.func @transform_0(%arg0: i32) -> (i32, i32) {
    %c0_i32 = arith.constant 0 : i32
    %c0_i32_0 = arith.constant 0 : i32
    return %arg0, %c0_i32 : i32, i32
  }
  func.func @transform_1(%arg0: i32) -> (i32, i32) {
    %c0_i32 = arith.constant 0 : i32
    %c0_i32_0 = arith.constant 0 : i32
    %c0_i32_1 = arith.constant 0 : i32
    return %c0_i32, %c0_i32_0 : i32, i32
  }
  func.func @transform_2(%arg0: i32) -> (i32, i32) {
    %c0_i32 = arith.constant 0 : i32
    %c0_i32_0 = arith.constant 0 : i32
    %c0_i32_1 = arith.constant 0 : i32
    return %c0_i32, %c0_i32_0 : i32, i32
  }
  func.func @transform_3(%arg0: i32) -> (i32, i32) {
    %c0_i32 = arith.constant 0 : i32
    %c0_i32_0 = arith.constant 0 : i32
    %c0_i32_1 = arith.constant 0 : i32
    return %c0_i32, %c0_i32_0 : i32, i32
  }
  func.func @transform_4(%arg0: i32) -> (i32, i32) {
    %c0_i32 = arith.constant 0 : i32
    %c0_i32_0 = arith.constant 0 : i32
    %c0_i32_1 = arith.constant 0 : i32
    return %c0_i32, %c0_i32_0 : i32, i32
  }
  func.func @transform_5(%arg0: i32) -> (i32, i32) {
    %c0_i32 = arith.constant 0 : i32
    %c0_i32_0 = arith.constant 0 : i32
    %c0_i32_1 = arith.constant 0 : i32
    return %c0_i32, %c0_i32_0 : i32, i32
  }
  func.func @transform_6(%arg0: i32) -> (i32, i32) {
    %c0_i32 = arith.constant 0 : i32
    %c0_i32_0 = arith.constant 0 : i32
    %c0_i32_1 = arith.constant 0 : i32
    return %c0_i32, %c0_i32_0 : i32, i32
  }
  func.func @transform_7(%arg0: i32) -> (i32, i32) {
    %c0_i32 = arith.constant 0 : i32
    %c0_i32_0 = arith.constant 0 : i32
    return %arg0, %c0_i32 : i32, i32
  }
}

</mosaic_0001>

<llo_original>
// kernel: relation_network_forward.1
$region0: #{relation_network_forward.1}
  #allocation0 [shape = 'u32[]', space=smem, size = 0x4, offset = 0x4, fixed_abs, tag = 'smem constant byte address 0x4 - core index']
  #allocation1 [shape = 'u32[144,128]{1,0:T(1,128)}', space=vmem, size = 0x12000, scoped, tag = 'internal scratch']
  #allocation2 [shape = 'f32[1,1]{1,0:T(1,128)S(1)}', space=vmem, size = 0x200, scoped, tag = 'scoped memory for relation_network_forward.1']
  %s0 = inlined_call_operand.vmem [shape: f32[8,64], index: 0, kind: input, shape index: {}]
  %s1 = inlined_call_operand.vmem [shape: f32[64,8], index: 1, kind: input, shape index: {}]
  %s2 = inlined_call_operand.vmem [shape: f32[1,8], index: 2, kind: input, shape index: {}]
  %s3 = inlined_call_operand.vmem [shape: f32[8,2], index: 3, kind: input, shape index: {}]
  %s4 = inlined_call_operand.vmem [shape: f32[1,2], index: 4, kind: input, shape index: {}]
  %s5 = inlined_call_operand.vmem [shape: f32[2,1], index: 5, kind: input, shape index: {}]
  %s6 = inlined_call_operand.<no memory space> [shape: f32[1,1], index: 6, kind: input, shape index: {}]
  %s7 = inlined_call_operand.vmem [shape: f32[8,1], index: 7, kind: output, shape index: {}]
  %s8 = sld [smem:[#allocation0]]
  $region38: #{relation_network_forward.1} parent=0
    _
  %s10 = ssub.s32 1, %s8
  %s11 = scalar_select 0, %s10, %s8
  %v12 = vstv %s6
  %13 = vst [vmem:[#allocation2] sm:$0x1] %v12
  // Predicated region
  $region2: #{relation_network_forward.1} parent=0 // pred_check
    _
  $region3: #{relation_network_forward.1} parent=0 // pred_check_branch
    %15 = sbr.rel (0) target = $region5
  $region4: #{relation_network_forward.1} parent=0 // pred_region
    _
  $region5: #{relation_network_forward.1} parent=0 // pred_fallthru
    _
  // Predicated region
  $region6: #{relation_network_forward.1} parent=0 // pred_check
    _
  $region7: #{relation_network_forward.1} parent=0 // pred_check_branch
    %17 = sbr.rel (0) target = $region9
  $region8: #{relation_network_forward.1} parent=0 // pred_region
    _
  $region9: #{relation_network_forward.1} parent=0 // pred_fallthru
    _
  // Predicated region
  $region10: #{relation_network_forward.1} parent=0 // pred_check
    _
  $region11: #{relation_network_forward.1} parent=0 // pred_check_branch
    %19 = sbr.rel (0) target = $region13
  $region12: #{relation_network_forward.1} parent=0 // pred_region
    _
  $region13: #{relation_network_forward.1} parent=0 // pred_fallthru
    _
  // Predicated region
  $region14: #{relation_network_forward.1} parent=0 // pred_check
    _
  $region15: #{relation_network_forward.1} parent=0 // pred_check_branch
    %21 = sbr.rel (0) target = $region17
  $region16: #{relation_network_forward.1} parent=0 // pred_region
    _
  $region17: #{relation_network_forward.1} parent=0 // pred_fallthru
    _
  // Predicated region
  $region18: #{relation_network_forward.1} parent=0 // pred_check
    _
  $region19: #{relation_network_forward.1} parent=0 // pred_check_branch
    %23 = sbr.rel (0) target = $region21
  $region20: #{relation_network_forward.1} parent=0 // pred_region
    _
  $region21: #{relation_network_forward.1} parent=0 // pred_fallthru
    _
  // Predicated region
  $region22: #{relation_network_forward.1} parent=0 // pred_check
    _
  $region23: #{relation_network_forward.1} parent=0 // pred_check_branch
    %25 = sbr.rel (0) target = $region25
  $region24: #{relation_network_forward.1} parent=0 // pred_region
    _
  $region25: #{relation_network_forward.1} parent=0 // pred_fallthru
    _
  // Predicated region
  $region26: #{relation_network_forward.1} parent=0 // pred_check
    _
  $region27: #{relation_network_forward.1} parent=0 // pred_check_branch
    %27 = sbr.rel (0) target = $region29
  $region28: #{relation_network_forward.1} parent=0 // pred_region
    _
  $region29: #{relation_network_forward.1} parent=0 // pred_fallthru
    _
  %v28 = vld [vmem:[%s0] sm:$0xff]
  %v29 = vld [vmem:[%s1] sm:$0xff]
  %v30 = vld [vmem:[%s1 + $0x8] sm:$0xff]
  %v31 = vld [vmem:[%s1 + $0x10] sm:$0xff]
  %v32 = vld [vmem:[%s1 + $0x18] sm:$0xff]
  %v33 = vld [vmem:[%s1 + $0x20] sm:$0xff]
  %v34 = vld [vmem:[%s1 + $0x28] sm:$0xff]
  %v35 = vld [vmem:[%s1 + $0x30] sm:$0xff]
  %v36 = vld [vmem:[%s1 + $0x38] sm:$0xff]
  %v37 = vld [vmem:[%s2] sm:$0x1]
  %v39 = vlaneseq
  %v40 = vshrl.u32 %v39, 7
  %v41 = vsub.s32 0, %v40
  %v42 = vrot.slane %v37, %v41
  %vm44 = vcmask 523264
  %v46 = vsel %vm44, %v28, 0
  %48 = vmatprep.subr.mxu0 0.0
  %49 = vmatpush1.msra.mxu0 %v29
  %50 = vmatprep.subr.mxu0 0.0
  %51 = vmatpush1.msra.mxu0 %v30
  %52 = vmatprep.subr.mxu0 0.0
  %53 = vmatpush1.msra.mxu0 %v31
  %54 = vmatprep.subr.mxu0 0.0
  %55 = vmatpush1.msra.mxu0 %v32
  %56 = vmatprep.subr.mxu0 0.0
  %57 = vmatpush1.msra.mxu0 %v33
  %58 = vmatprep.subr.mxu0 0.0
  %59 = vmatpush1.msra.mxu0 %v34
  %60 = vmatprep.subr.mxu0 0.0
  %61 = vmatpush1.msra.mxu0 %v35
  %62 = vmatprep.subr.mxu0 0.0
  %63 = vmatpush1.msra.mxu0 %v36
  %64 = vmatprep.subr.mxu0 0.0
  %65 = vmatpush1.msra.mxu0 0.0
  %66 = vmatprep.subr.mxu0 0.0
  %67 = vmatpush1.msra.mxu0 0.0
  %68 = vmatprep.subr.mxu0 0.0
  %69 = vmatpush1.msra.mxu0 0.0
  %70 = vmatprep.subr.mxu0 0.0
  %71 = vmatpush1.msra.mxu0 0.0
  %72 = vmatprep.subr.mxu0 0.0
  %73 = vmatpush1.msra.mxu0 0.0
  %74 = vmatprep.subr.mxu0 0.0
  %75 = vmatpush1.msra.mxu0 0.0
  %76 = vmatprep.subr.mxu0 0.0
  %77 = vmatpush1.msra.mxu0 0.0
  %78 = vmatprep.subr.mxu0 0.0
  %79 = vmatpush1.msra.mxu0 0.0
  %80 = vmatprep.subr.mxu0 0.0
  %81 = vmatpush1.msra.mxu0 0.0
  %82 = vmatprep.subr.mxu0 0.0
  %83 = vmatpush1.msra.mxu0 0.0
  %84 = vmatprep.subr.mxu0 0.0
  %85 = vmatpush1.msra.mxu0 0.0
  %86 = vmatprep.subr.mxu0 0.0
  %87 = vmatpush1.msra.mxu0 0.0
  %88 = vmatprep.subr.mxu0 0.0
  %89 = vmatpush1.msra.mxu0 0.0
  %90 = vmatprep.subr.mxu0 0.0
  %91 = vmatpush1.msra.mxu0 0.0
  %92 = vmatprep.subr.mxu0 0.0
  %93 = vmatpush1.msra.mxu0 0.0
  %94 = vmatprep.subr.mxu0 0.0
  %95 = vmatpush1.msra.mxu0 0.0
  %96 = vmatprep.subr.mxu0 0.0
  %97 = vmatpush1.msra.mxu0 0.0
  %98 = vmatprep.subr.mxu0 0.0
  %99 = vmatpush1.msra.mxu0 0.0
  %100 = vmatprep.subr.mxu0 0.0
  %101 = vmatpush1.msra.mxu0 0.0
  %102 = vmatprep.subr.mxu0 0.0
  %103 = vmatpush1.msra.mxu0 0.0
  %104 = vmatprep.subr.mxu0 0.0
  %105 = vmatpush1.msra.mxu0 0.0
  %106 = vmatprep.subr.mxu0 0.0
  %107 = vmatpush1.msra.mxu0 0.0
  %108 = vmatprep.subr.mxu0 0.0
  %109 = vmatpush1.msra.mxu0 0.0
  %110 = vmatprep.subr.mxu0 0.0
  %111 = vmatpush1.msra.mxu0 0.0
  %112 = vmatprep.mubr.f32.mxu0 0.0
  %113 = vmatmul.mubr.f32.gmra.mrb[0].mxu0 %v46
  %v114 = vpop.f32.mrb[0].mxu0
  %v115 = vadd.f32 %v42, %v114
  %v116 = vpop.f32.mrb[0].mxu0
  %117 = vdwg.mxu0
  %v118 = vmax.f32 %v115, 0.0
  %v119 = vld [vmem:[%s3] sm:$0xff]
  %v120 = vld [vmem:[%s4] sm:$0x1]
  %v122 = vlaneseq
  %v123 = vshrl.u32 %v122, 7
  %v124 = vsub.s32 0, %v123
  %v125 = vrot.slane %v120, %v124
  %vm127 = vcmask 64512
  %v129 = vsel %vm127, %v118, 0
  %131 = vmatprep.subr.mxu0 0.0
  %132 = vmatpush1.msra.mxu0 %v119
  %133 = vmatprep.subr.mxu0 0.0
  %134 = vmatpush1.msra.mxu0 0.0
  %135 = vmatprep.subr.mxu0 0.0
  %136 = vmatpush1.msra.mxu0 0.0
  %137 = vmatprep.subr.mxu0 0.0
  %138 = vmatpush1.msra.mxu0 0.0
  %139 = vmatprep.subr.mxu0 0.0
  %140 = vmatpush1.msra.mxu0 0.0
  %141 = vmatprep.subr.mxu0 0.0
  %142 = vmatpush1.msra.mxu0 0.0
  %143 = vmatprep.subr.mxu0 0.0
  %144 = vmatpush1.msra.mxu0 0.0
  %145 = vmatprep.subr.mxu0 0.0
  %146 = vmatpush1.msra.mxu0 0.0
  %147 = vmatprep.subr.mxu0 0.0
  %148 = vmatpush1.msra.mxu0 0.0
  %149 = vmatprep.subr.mxu0 0.0
  %150 = vmatpush1.msra.mxu0 0.0
  %151 = vmatprep.subr.mxu0 0.0
  %152 = vmatpush1.msra.mxu0 0.0
  %153 = vmatprep.subr.mxu0 0.0
  %154 = vmatpush1.msra.mxu0 0.0
  %155 = vmatprep.subr.mxu0 0.0
  %156 = vmatpush1.msra.mxu0 0.0
  %157 = vmatprep.subr.mxu0 0.0
  %158 = vmatpush1.msra.mxu0 0.0
  %159 = vmatprep.subr.mxu0 0.0
  %160 = vmatpush1.msra.mxu0 0.0
  %161 = vmatprep.subr.mxu0 0.0
  %162 = vmatpush1.msra.mxu0 0.0
  %163 = vmatprep.subr.mxu0 0.0
  %164 = vmatpush1.msra.mxu0 0.0
  %165 = vmatprep.subr.mxu0 0.0
  %166 = vmatpush1.msra.mxu0 0.0
  %167 = vmatprep.subr.mxu0 0.0
  %168 = vmatpush1.msra.mxu0 0.0
  %169 = vmatprep.subr.mxu0 0.0
  %170 = vmatpush1.msra.mxu0 0.0
  %171 = vmatprep.subr.mxu0 0.0
  %172 = vmatpush1.msra.mxu0 0.0
  %173 = vmatprep.subr.mxu0 0.0
  %174 = vmatpush1.msra.mxu0 0.0
  %175 = vmatprep.subr.mxu0 0.0
  %176 = vmatpush1.msra.mxu0 0.0
  %177 = vmatprep.subr.mxu0 0.0
  %178 = vmatpush1.msra.mxu0 0.0
  %179 = vmatprep.subr.mxu0 0.0
  %180 = vmatpush1.msra.mxu0 0.0
  %181 = vmatprep.subr.mxu0 0.0
  %182 = vmatpush1.msra.mxu0 0.0
  %183 = vmatprep.subr.mxu0 0.0
  %184 = vmatpush1.msra.mxu0 0.0
  %185 = vmatprep.subr.mxu0 0.0
  %186 = vmatpush1.msra.mxu0 0.0
  %187 = vmatprep.subr.mxu0 0.0
  %188 = vmatpush1.msra.mxu0 0.0
  %189 = vmatprep.subr.mxu0 0.0
  %190 = vmatpush1.msra.mxu0 0.0
  %191 = vmatprep.subr.mxu0 0.0
  %192 = vmatpush1.msra.mxu0 0.0
  %193 = vmatprep.subr.mxu0 0.0
  %194 = vmatpush1.msra.mxu0 0.0
  %195 = vmatprep.mubr.f32.mxu0 0.0
  %196 = vmatmul.mubr.f32.gmra.mrb[0].mxu0 %v129
  %v197 = vpop.f32.mrb[0].mxu0
  %v198 = vadd.f32 %v125, %v197
  %v199 = vpop.f32.mrb[0].mxu0
  %200 = vdwg.mxu0
  %v201 = vmax.f32 %v198, 0.0
  %v202 = vld [vmem:[%s5] sm:$0x3]
  %v203 = vld [vmem:[#allocation2] sm:$0x1]
  %v205 = vlaneseq
  %v206 = vshrl.u32 %v205, 7
  %v207 = vsub.s32 0, %v206
  %v208 = vrot.slane %v203, %v207
  %vm210 = vcmask 15360
  %v212 = vsel %vm210, %v201, 0
  %vm214 = vcmask 1041408
  %v216 = vsel %vm214, %v202, 0
  %218 = vmatprep.subr.mxu0 0.0
  %219 = vmatpush1.msra.mxu0 %v216
  %220 = vmatprep.subr.mxu0 0.0
  %221 = vmatpush1.msra.mxu0 0.0
  %222 = vmatprep.subr.mxu0 0.0
  %223 = vmatpush1.msra.mxu0 0.0
  %224 = vmatprep.subr.mxu0 0.0
  %225 = vmatpush1.msra.mxu0 0.0
  %226 = vmatprep.subr.mxu0 0.0
  %227 = vmatpush1.msra.mxu0 0.0
  %228 = vmatprep.subr.mxu0 0.0
  %229 = vmatpush1.msra.mxu0 0.0
  %230 = vmatprep.subr.mxu0 0.0
  %231 = vmatpush1.msra.mxu0 0.0
  %232 = vmatprep.subr.mxu0 0.0
  %233 = vmatpush1.msra.mxu0 0.0
  %234 = vmatprep.subr.mxu0 0.0
  %235 = vmatpush1.msra.mxu0 0.0
  %236 = vmatprep.subr.mxu0 0.0
  %237 = vmatpush1.msra.mxu0 0.0
  %238 = vmatprep.subr.mxu0 0.0
  %239 = vmatpush1.msra.mxu0 0.0
  %240 = vmatprep.subr.mxu0 0.0
  %241 = vmatpush1.msra.mxu0 0.0
  %242 = vmatprep.subr.mxu0 0.0
  %243 = vmatpush1.msra.mxu0 0.0
  %244 = vmatprep.subr.mxu0 0.0
  %245 = vmatpush1.msra.mxu0 0.0
  %246 = vmatprep.subr.mxu0 0.0
  %247 = vmatpush1.msra.mxu0 0.0
  %248 = vmatprep.subr.mxu0 0.0
  %249 = vmatpush1.msra.mxu0 0.0
  %250 = vmatprep.subr.mxu0 0.0
  %251 = vmatpush1.msra.mxu0 0.0
  %252 = vmatprep.subr.mxu0 0.0
  %253 = vmatpush1.msra.mxu0 0.0
  %254 = vmatprep.subr.mxu0 0.0
  %255 = vmatpush1.msra.mxu0 0.0
  %256 = vmatprep.subr.mxu0 0.0
  %257 = vmatpush1.msra.mxu0 0.0
  %258 = vmatprep.subr.mxu0 0.0
  %259 = vmatpush1.msra.mxu0 0.0
  %260 = vmatprep.subr.mxu0 0.0
  %261 = vmatpush1.msra.mxu0 0.0
  %262 = vmatprep.subr.mxu0 0.0
  %263 = vmatpush1.msra.mxu0 0.0
  %264 = vmatprep.subr.mxu0 0.0
  %265 = vmatpush1.msra.mxu0 0.0
  %266 = vmatprep.subr.mxu0 0.0
  %267 = vmatpush1.msra.mxu0 0.0
  %268 = vmatprep.subr.mxu0 0.0
  %269 = vmatpush1.msra.mxu0 0.0
  %270 = vmatprep.subr.mxu0 0.0
  %271 = vmatpush1.msra.mxu0 0.0
  %272 = vmatprep.subr.mxu0 0.0
  %273 = vmatpush1.msra.mxu0 0.0
  %274 = vmatprep.subr.mxu0 0.0
  %275 = vmatpush1.msra.mxu0 0.0
  %276 = vmatprep.subr.mxu0 0.0
  %277 = vmatpush1.msra.mxu0 0.0
  %278 = vmatprep.subr.mxu0 0.0
  %279 = vmatpush1.msra.mxu0 0.0
  %280 = vmatprep.subr.mxu0 0.0
  %281 = vmatpush1.msra.mxu0 0.0
  %282 = vmatprep.mubr.f32.mxu0 0.0
  %283 = vmatmul.mubr.f32.gmra.mrb[0].mxu0 %v212
  %v284 = vpop.f32.mrb[0].mxu0
  %v285 = vadd.f32 %v208, %v284
  %v286 = vpop.f32.mrb[0].mxu0
  %287 = vdwg.mxu0
  %vm288 = vcmask 7168
  %289 = vst.msk [vmem:[%s7] sm:$0xff] %vm288, %v285
  // Predicated region
  $region30: #{relation_network_forward.1} parent=0 // pred_check
    _
  $region31: #{relation_network_forward.1} parent=0 // pred_check_branch
    %291 = sbr.rel (0) target = $region33
  $region32: #{relation_network_forward.1} parent=0 // pred_region
    _
  $region33: #{relation_network_forward.1} parent=0 // pred_fallthru
    _
  // Predicated region
  $region34: #{relation_network_forward.1} parent=0 // pred_check
    _
  $region35: #{relation_network_forward.1} parent=0 // pred_check_branch
    %293 = sbr.rel (0) target = $region37
  $region36: #{relation_network_forward.1} parent=0 // pred_region
    _
  $region37: #{relation_network_forward.1} parent=0 // pred_fallthru
    _

</llo_original>
